<compile_context>
chip_gen: v5e
topology: v5e:2x2
jax: 0.10.0
libtpu: 0.0.40
codegen_flags: <defaults>
</compile_context>

<pallas_src>
import functools

import jax
import jax.numpy as jnp
from jax.experimental import pallas as pl
from jax.experimental.pallas import tpu as pltpu


LN_EPS = 1e-5
MLP_ROW_TILE = 512    # cap on rows per MLP grid step
MLP_HF_TILE = 2048    # cap on hidden-dim columns per MLP grid step


def _layernorm(x, gamma, beta, eps=LN_EPS):
    mean = jnp.mean(x, axis=-1, keepdims=True)
    var = jnp.mean(jnp.square(x - mean), axis=-1, keepdims=True)
    inv = jax.lax.rsqrt(var + eps)
    return (x - mean) * inv * gamma + beta


def _divisor_tile(total, cap, quantum):
    """Largest multiple of `quantum` that divides `total` and is <= cap.
    Falls back to `total` (single block) so no padded blocks are ever computed."""
    if total <= cap:
        return total
    t = (cap // quantum) * quantum
    while t >= quantum:
        if total % t == 0:
            return t
        t -= quantum
    return total


def _vmem_limit_bytes():
    cap = 64 * 1024 * 1024
    try:
        info = pltpu.get_tpu_info()
        cap = int(getattr(info, "vmem_capacity_bytes", cap))
    except Exception:
        pass
    return int(min(cap * 3 // 4, 100 * 1024 * 1024))


# ---------------------------------------------------------------------------
# Kernel 1:  y = x + proj( SDPA( qkv( LN1(x) ) ) )          (one batch / step)
# ---------------------------------------------------------------------------
def attn_block_kernel(
    x_ref,                    # (1, N, C)  input activations
    wqkv_ref,                 # (C, 3C)    bf16, pre-transposed, q cols pre-scaled
    bqkv_ref,                 # (1, 3C)    f32, [q_bias*scale, 0 (k zero buf), v_bias]
    wproj_ref,                # (C, C)     bf16, pre-transposed (in, out)
    bproj_ref,                # (1, C)     f32
    g1_ref, b1_ref,           # (1, C)     f32, LayerNorm1 affine
    o_ref,                    # (1, N, C)
    head_out,                 # VMEM scratch (N, C) f32 — per-head PV outputs
    *, num_heads, head_dim,
):
    C = num_heads * head_dim

    x = x_ref[0].astype(jnp.float32)                        # (N, C)
    xn = _layernorm(x, g1_ref[...], b1_ref[...])            # pre-norm, f32
    xn_bf = xn.astype(jnp.bfloat16)

    # Fused q/k/v projection: single (N,C)@(C,3C) bf16 matmul, f32 accumulation.
    # The q slice is already scaled by head_dim**-0.5 (folded at prepare time).
    qkv = jnp.dot(xn_bf, wqkv_ref[...],
                  preferred_element_type=jnp.float32) + bqkv_ref[...]

    # Per-head SDPA; head outputs land in the (N, C) scratch at lane offset
    # h*head_dim so the output projection is ONE fully packed (N,C)@(C,C) matmul.
    for h in range(num_heads):
        lo = h * head_dim
        qh = qkv[:, lo:lo + head_dim].astype(jnp.bfloat16)              # (N, hd)
        kh = qkv[:, C + lo:C + lo + head_dim].astype(jnp.bfloat16)      # (N, hd)
        vh = qkv[:, 2 * C + lo:2 * C + lo + head_dim].astype(jnp.bfloat16)

        # scores: contract last dims directly (no explicit k.T / XLU transpose)
        s = jax.lax.dot_general(
            qh, kh, (((1,), (1,)), ((), ())),
            preferred_element_type=jnp.float32)              # (N, N) f32
        s = s - jnp.max(s, axis=-1, keepdims=True)
        p = jnp.exp(s)
        denom = jnp.sum(p, axis=-1, keepdims=True)
        p = p * pl.reciprocal(denom, approx=True)             # divide -> EUP slot

        head_out[:, lo:lo + head_dim] = jnp.dot(
            p.astype(jnp.bfloat16), vh, preferred_element_type=jnp.float32)

    proj = jnp.dot(head_out[...].astype(jnp.bfloat16), wproj_ref[...],
                   preferred_element_type=jnp.float32)
    o_ref[0] = (x + proj + bproj_ref[...]).astype(o_ref.dtype)


# ---------------------------------------------------------------------------
# Kernel 2:  out = y + fc2( gelu( fc1( LN2(y) ) ) )
# grid = (row tiles [parallel], Hf chunks [arbitrary, accumulated])
# ---------------------------------------------------------------------------
def mlp_block_kernel(
    y_ref,                    # (T, C)
    wfc1_ref,                 # (C, Hc)  bf16 chunk, pre-transposed
    bfc1_ref,                 # (1, Hc)  f32 chunk
    wfc2_ref,                 # (Hc, C)  bf16 chunk, pre-transposed
    bfc2_ref,                 # (1, C)   f32
    g2_ref, b2_ref,           # (1, C)   f32, LayerNorm2 affine
    o_ref,                    # (T, C)
    yn_scratch,               # VMEM (T, C) bf16 — cached LN2(y)
    acc_scratch,              # VMEM (T, C) f32 — fc2 partial-sum accumulator
):
    j = pl.program_id(1)

    @pl.when(j == 0)
    def _():
        y = y_ref[...].astype(jnp.float32)
        yn_scratch[...] = _layernorm(y, g2_ref[...], b2_ref[...]).astype(jnp.bfloat16)
        acc_scratch[...] = jnp.zeros_like(acc_scratch)

    h1 = jnp.dot(yn_scratch[...], wfc1_ref[...],
                 preferred_element_type=jnp.float32) + bfc1_ref[...]
    h1 = jax.nn.gelu(h1, approximate=False)                   # exact erf GELU, f32
    acc_scratch[...] += jnp.dot(h1.astype(jnp.bfloat16), wfc2_ref[...],
                                preferred_element_type=jnp.float32)

    @pl.when(j == pl.num_programs(1) - 1)
    def _():
        y = y_ref[...].astype(jnp.float32)
        o_ref[...] = (y + acc_scratch[...] + bfc2_ref[...]).astype(o_ref.dtype)


# ---------------------------------------------------------------------------
# Wrappers
# ---------------------------------------------------------------------------
def prepare_params(params, num_heads):
    """One-time parameter prep (hoisted out of the forward path):
    transpose nn.Linear weights to (in, out), build the fused (C,3C) qkv weight
    with the attention scale folded into the q slice, concatenate the qkv bias
    (zeros for the k slice), cast matmul weights to bf16, reshape biases /
    LayerNorm affines to (1, C)."""
    C = params["w_proj"].shape[0]
    hd = C // num_heads
    scale = hd ** -0.5

    w_qkv = params["w_qkv"].astype(jnp.float32)               # (3C, C), (out, in)
    wqkv_t = jnp.concatenate(
        [w_qkv[:C].T * scale, w_qkv[C:2 * C].T, w_qkv[2 * C:].T], axis=1)  # (C, 3C)
    bqkv = jnp.concatenate(
        [params["q_bias"].astype(jnp.float32) * scale,
         jnp.zeros((C,), jnp.float32),            # k_bias: registered zero buffer
         params["v_bias"].astype(jnp.float32)]).reshape(1, 3 * C)

    prep = {
        "wqkv": wqkv_t.astype(jnp.bfloat16),                           # (C, 3C)
        "bqkv": bqkv,                                                  # (1, 3C)
        "wproj": jnp.asarray(params["w_proj"].T, jnp.bfloat16),        # (C, C)
        "bproj": params["b_proj"].reshape(1, C).astype(jnp.float32),
        "g1": params["ln1_g"].reshape(1, C).astype(jnp.float32),
        "b1": params["ln1_b"].reshape(1, C).astype(jnp.float32),
        "wfc1": jnp.asarray(params["w_fc1"].T, jnp.bfloat16),          # (C, Hf)
        "bfc1": params["b_fc1"].reshape(1, -1).astype(jnp.float32),
        "wfc2": jnp.asarray(params["w_fc2"].T, jnp.bfloat16),          # (Hf, C)
        "bfc2": params["b_fc2"].reshape(1, C).astype(jnp.float32),
        "g2": params["ln2_g"].reshape(1, C).astype(jnp.float32),
        "b2": params["ln2_b"].reshape(1, C).astype(jnp.float32),
    }
    return {k: jnp.asarray(v) for k, v in prep.items()}


def eva_block(x, prep, *, num_heads):
    B, N, C = x.shape
    head_dim = C // num_heads
    Hf = prep["wfc1"].shape[1]
    vmem_limit = _vmem_limit_bytes()

    def const(shape):
        # Grid-invariant operand: block index never changes -> DMA'd once.
        return pl.BlockSpec(shape, lambda *_: (0,) * len(shape))

    # ---- call 1: LN1 + attention + residual, one batch element per step ----
    attn_cost = pl.CostEstimate(
        flops=int(B * (8 * N * C * C + 4 * N * N * C)),
        transcendentals=int(B * num_heads * N * N),
        bytes_accessed=int(2 * B * N * C * x.dtype.itemsize
                           + 4 * C * C * 2 + 8 * C * 4),
    )
    y = pl.pallas_call(
        functools.partial(attn_block_kernel,
                          num_heads=num_heads, head_dim=head_dim),
        out_shape=jax.ShapeDtypeStruct((B, N, C), x.dtype),
        grid=(B,),
        in_specs=[
            pl.BlockSpec((1, N, C), lambda b: (b, 0, 0)),              # x
            const((C, 3 * C)), const((1, 3 * C)),                      # fused qkv
            const((C, C)), const((1, C)),                              # proj
            const((1, C)), const((1, C)),                              # ln1 g/b
        ],
        out_specs=pl.BlockSpec((1, N, C), lambda b: (b, 0, 0)),
        scratch_shapes=[pltpu.VMEM((N, C), jnp.float32)],              # head_out
        compiler_params=pltpu.CompilerParams(
            dimension_semantics=("parallel",),
            vmem_limit_bytes=vmem_limit,
        ),
        cost_estimate=attn_cost,
    )(x, prep["wqkv"], prep["bqkv"], prep["wproj"], prep["bproj"],
      prep["g1"], prep["b1"])

    # ---- call 2: LN2 + MLP + residual, (row tiles) x (Hf chunks) grid ----
    rows = B * N
    row_tile = _divisor_tile(rows, MLP_ROW_TILE, 8)
    if rows // row_tile == 1 and rows >= 16 and rows % 16 == 0:
        row_tile = rows // 2        # >=2 'parallel' steps for v7x megacore
    hf_tile = _divisor_tile(Hf, MLP_HF_TILE, 128)
    n_row = rows // row_tile
    n_hf = Hf // hf_tile

    y2 = y.reshape(rows, C)
    mlp_cost = pl.CostEstimate(
        flops=int(4 * rows * C * Hf),
        transcendentals=int(rows * Hf),
        bytes_accessed=int(2 * rows * C * x.dtype.itemsize
                           + n_row * 2 * C * Hf * 2 + (Hf + 3 * C) * 4),
    )
    out = pl.pallas_call(
        mlp_block_kernel,
        out_shape=jax.ShapeDtypeStruct((rows, C), x.dtype),
        grid=(n_row, n_hf),
        in_specs=[
            pl.BlockSpec((row_tile, C), lambda i, j: (i, 0)),          # y rows
            pl.BlockSpec((C, hf_tile), lambda i, j: (0, j)),           # fc1 w chunk
            pl.BlockSpec((1, hf_tile), lambda i, j: (0, j)),           # fc1 b chunk
            pl.BlockSpec((hf_tile, C), lambda i, j: (j, 0)),           # fc2 w chunk
            const((1, C)),                                             # fc2 b
            const((1, C)), const((1, C)),                              # ln2 g/b
        ],
        out_specs=pl.BlockSpec((row_tile, C), lambda i, j: (i, 0)),
        scratch_shapes=[pltpu.VMEM((row_tile, C), jnp.bfloat16),       # LN2(y)
                        pltpu.VMEM((row_tile, C), jnp.float32)],       # fc2 acc
        compiler_params=pltpu.CompilerParams(
            dimension_semantics=("parallel", "arbitrary"),
            vmem_limit_bytes=vmem_limit,
        ),
        cost_estimate=mlp_cost,
    )(y2, prep["wfc1"], prep["bfc1"], prep["wfc2"], prep["bfc2"],
      prep["g2"], prep["b2"])
    return out.reshape(B, N, C)


# ---------------------------------------------------------------------------
# Pure-JAX reference (pre-norm EvaBlock forward), params in nn.Linear layout.
# ---------------------------------------------------------------------------
def eva_block_reference(x, params, *, num_heads):
    B, N, C = x.shape
    hd = C // num_heads

    def ln(v, g, b):
        m = jnp.mean(v, -1, keepdims=True)
        var = jnp.mean((v - m) ** 2, -1, keepdims=True)
        return (v - m) * jax.lax.rsqrt(var + LN_EPS) * g + b

    xn = ln(x, params["ln1_g"], params["ln1_b"])
    qkv_bias = jnp.concatenate(
        [params["q_bias"], jnp.zeros((C,), x.dtype), params["v_bias"]])
    qkv = xn @ params["w_qkv"].T + qkv_bias
    qkv = qkv.reshape(B, N, 3, num_heads, hd).transpose(2, 0, 3, 1, 4)
    q, k, v = qkv[0], qkv[1], qkv[2]
    s = (q * hd ** -0.5) @ k.transpose(0, 1, 3, 2)
    p = jax.nn.softmax(s, axis=-1)
    o = (p @ v).transpose(0, 2, 1, 3).reshape(B, N, C)
    o = o @ params["w_proj"].T + params["b_proj"]
    x = x + o
    yn = ln(x, params["ln2_g"], params["ln2_b"])
    h = jax.nn.gelu(yn @ params["w_fc1"].T + params["b_fc1"], approximate=False)
    h = h @ params["w_fc2"].T + params["b_fc2"]
    return x + h


def init_params(key, dim, mlp_ratio=4.0):
    hidden = int(dim * mlp_ratio)
    ks = jax.random.split(key, 8)
    s = 0.02
    return {
        # nn.Linear weight convention: (out_features, in_features)
        "w_qkv": s * jax.random.normal(ks[0], (3 * dim, dim), jnp.float32),
        "q_bias": s * jax.random.normal(ks[1], (dim,), jnp.float32),
        "v_bias": s * jax.random.normal(ks[2], (dim,), jnp.float32),
        "w_proj": s * jax.random.normal(ks[3], (dim, dim), jnp.float32),
        "b_proj": s * jax.random.normal(ks[4], (dim,), jnp.float32),
        "ln1_g": jnp.ones((dim,), jnp.float32),
        "ln1_b": jnp.zeros((dim,), jnp.float32),
        "w_fc1": s * jax.random.normal(ks[5], (hidden, dim), jnp.float32),
        "b_fc1": s * jax.random.normal(ks[6], (hidden,), jnp.float32),
        "w_fc2": s * jax.random.normal(ks[7], (dim, hidden), jnp.float32),
        "b_fc2": jnp.zeros((dim,), jnp.float32),
        "ln2_g": jnp.ones((dim,), jnp.float32),
        "ln2_b": jnp.zeros((dim,), jnp.float32),
    }


if __name__ == "__main__":
    B, N, dim, num_heads = 2, 8, 32, 4

    key = jax.random.PRNGKey(0)
    kx, kp = jax.random.split(key)
    x = jax.random.normal(kx, (B, N, dim), jnp.float32)
    params = init_params(kp, dim)
    prep = prepare_params(params, num_heads)   # one-time weight prep (hoisted)

    out = eva_block(x, prep, num_heads=num_heads)
    out = jax.block_until_ready(out)

    assert out.shape == (B, N, dim) and out.dtype == jnp.float32
    assert bool(jnp.all(jnp.isfinite(out)))

    # Loose tolerance: kernel uses bf16 matmul operands (f32 accumulation) and
    # an approx EUP reciprocal in the softmax denominator.
    ref = eva_block_reference(x, params, num_heads=num_heads)
    err = float(jnp.max(jnp.abs(out - ref)))
    assert err < 5e-2, f"max abs err {err}"

    print("KERNEL_OK")
</pallas_src>

<mosaic_0001>
module attributes {stable_mosaic.version = 11 : i64} {
  func.func @attn_block_kernel(%arg0: i32, %arg1: memref<1x8x32xf32, #tpu.memory_space<vmem>>, %arg2: memref<32x96xbf16, #tpu.memory_space<vmem>>, %arg3: memref<1x96xf32, #tpu.memory_space<vmem>>, %arg4: memref<32x32xbf16, #tpu.memory_space<vmem>>, %arg5: memref<1x32xf32, #tpu.memory_space<vmem>>, %arg6: memref<1x32xf32, #tpu.memory_space<vmem>>, %arg7: memref<1x32xf32, #tpu.memory_space<vmem>>, %arg8: memref<1x8x32xf32, #tpu.memory_space<vmem>>, %arg9: memref<8x32xf32, #tpu.memory_space<vmem>>) attributes {dimension_semantics = [#tpu.dimension_semantics<parallel>], iteration_bounds = array<i64: 2>, scalar_prefetch = 0 : i64, scratch_operands = 1 : i64, tpu.core_type = #tpu.core_type<tc>, window_params = [{transform_indices = @transform_0, window_bounds = array<i64: 1, 8, 32>}, {pipeline_mode = #tpu.pipeline_mode<synchronous>, transform_indices = @transform_1, window_bounds = array<i64: 32, 96>}, {pipeline_mode = #tpu.pipeline_mode<synchronous>, transform_indices = @transform_2, window_bounds = array<i64: 1, 96>}, {pipeline_mode = #tpu.pipeline_mode<synchronous>, transform_indices = @transform_3, window_bounds = array<i64: 32, 32>}, {pipeline_mode = #tpu.pipeline_mode<synchronous>, transform_indices = @transform_4, window_bounds = array<i64: 1, 32>}, {pipeline_mode = #tpu.pipeline_mode<synchronous>, transform_indices = @transform_5, window_bounds = array<i64: 1, 32>}, {pipeline_mode = #tpu.pipeline_mode<synchronous>, transform_indices = @transform_6, window_bounds = array<i64: 1, 32>}, {transform_indices = @transform_7, window_bounds = array<i64: 1, 8, 32>}]} {
    %c0 = arith.constant 0 : index
    %c0_0 = arith.constant 0 : index
    %c0_1 = arith.constant 0 : index
    %0 = vector.load %arg1[%c0, %c0_0, %c0_1] : memref<1x8x32xf32, #tpu.memory_space<vmem>>, vector<1x8x32xf32>
    %1 = vector.shape_cast %0 : vector<1x8x32xf32> to vector<8x32xf32>
    %c0_2 = arith.constant 0 : index
    %c0_3 = arith.constant 0 : index
    %2 = vector.load %arg6[%c0_2, %c0_3] : memref<1x32xf32, #tpu.memory_space<vmem>>, vector<1x32xf32>
    %c0_4 = arith.constant 0 : index
    %c0_5 = arith.constant 0 : index
    %3 = vector.load %arg7[%c0_4, %c0_5] : memref<1x32xf32, #tpu.memory_space<vmem>>, vector<1x32xf32>
    %cst = arith.constant dense<0.000000e+00> : vector<8xf32>
    %4 = vector.multi_reduction <add>, %1, %cst [1] : vector<8x32xf32> to vector<8xf32>
    %5 = vector.shape_cast %4 : vector<8xf32> to vector<8x1xf32>
    %cst_6 = arith.constant 3.200000e+01 : f32
    %6 = vector.broadcast %cst_6 : f32 to vector<8x1xf32>
    %7 = arith.divf %5, %6 : vector<8x1xf32>
    %8 = vector.broadcast %7 : vector<8x1xf32> to vector<8x32xf32>
    %9 = arith.subf %1, %8 : vector<8x32xf32>
    %10 = arith.mulf %9, %9 : vector<8x32xf32>
    %cst_7 = arith.constant dense<0.000000e+00> : vector<8xf32>
    %11 = vector.multi_reduction <add>, %10, %cst_7 [1] : vector<8x32xf32> to vector<8xf32>
    %12 = vector.shape_cast %11 : vector<8xf32> to vector<8x1xf32>
    %cst_8 = arith.constant 3.200000e+01 : f32
    %13 = vector.broadcast %cst_8 : f32 to vector<8x1xf32>
    %14 = arith.divf %12, %13 : vector<8x1xf32>
    %cst_9 = arith.constant 9.99999974E-6 : f32
    %15 = vector.broadcast %cst_9 : f32 to vector<8x1xf32>
    %16 = arith.addf %14, %15 : vector<8x1xf32>
    %17 = math.rsqrt %16 : vector<8x1xf32>
    %18 = vector.broadcast %7 : vector<8x1xf32> to vector<8x32xf32>
    %19 = arith.subf %1, %18 : vector<8x32xf32>
    %20 = vector.broadcast %17 : vector<8x1xf32> to vector<8x32xf32>
    %21 = arith.mulf %19, %20 : vector<8x32xf32>
    %22 = vector.broadcast %2 : vector<1x32xf32> to vector<8x32xf32>
    %23 = arith.mulf %21, %22 : vector<8x32xf32>
    %24 = vector.broadcast %3 : vector<1x32xf32> to vector<8x32xf32>
    %25 = arith.addf %23, %24 : vector<8x32xf32>
    %26 = arith.truncf %25 : vector<8x32xf32> to vector<8x32xbf16>
    %c0_10 = arith.constant 0 : index
    %c0_11 = arith.constant 0 : index
    %27 = vector.load %arg2[%c0_10, %c0_11] : memref<32x96xbf16, #tpu.memory_space<vmem>>, vector<32x96xbf16>
    %cst_12 = arith.constant dense<0.000000e+00> : vector<8x96xf32>
    %28 = tpu.matmul %26, %27, %cst_12 {dimension_numbers = #tpu.dot_dimension_numbers<[1], [0], [0], [1], [0, 0, 1, 1], [], []>} : vector<8x32xbf16>, vector<32x96xbf16>, vector<8x96xf32> -> vector<8x96xf32>
    %c0_13 = arith.constant 0 : index
    %c0_14 = arith.constant 0 : index
    %29 = vector.load %arg3[%c0_13, %c0_14] : memref<1x96xf32, #tpu.memory_space<vmem>>, vector<1x96xf32>
    %30 = vector.broadcast %29 : vector<1x96xf32> to vector<8x96xf32>
    %31 = arith.addf %28, %30 : vector<8x96xf32>
    %32 = vector.extract_strided_slice %31 {offsets = [0, 0], sizes = [8, 8], strides = [1, 1]} : vector<8x96xf32> to vector<8x8xf32>
    %33 = arith.truncf %32 : vector<8x8xf32> to vector<8x8xbf16>
    %34 = vector.extract_strided_slice %31 {offsets = [0, 32], sizes = [8, 8], strides = [1, 1]} : vector<8x96xf32> to vector<8x8xf32>
    %35 = arith.truncf %34 : vector<8x8xf32> to vector<8x8xbf16>
    %36 = vector.extract_strided_slice %31 {offsets = [0, 64], sizes = [8, 8], strides = [1, 1]} : vector<8x96xf32> to vector<8x8xf32>
    %37 = arith.truncf %36 : vector<8x8xf32> to vector<8x8xbf16>
    %cst_15 = arith.constant dense<0.000000e+00> : vector<8x8xf32>
    %38 = tpu.matmul %33, %35, %cst_15 {dimension_numbers = #tpu.dot_dimension_numbers<[1], [1], [0], [0], [0, 0, 1, 0], [], []>} : vector<8x8xbf16>, vector<8x8xbf16>, vector<8x8xf32> -> vector<8x8xf32>
    %cst_16 = arith.constant dense<0xFF800000> : vector<8xf32>
    %39 = vector.multi_reduction <maximumf>, %38, %cst_16 [1] : vector<8x8xf32> to vector<8xf32>
    %40 = vector.shape_cast %39 : vector<8xf32> to vector<8x1xf32>
    %41 = vector.broadcast %40 : vector<8x1xf32> to vector<8x8xf32>
    %42 = arith.subf %38, %41 : vector<8x8xf32>
    %43 = math.exp %42 : vector<8x8xf32>
    %cst_17 = arith.constant dense<0.000000e+00> : vector<8xf32>
    %44 = vector.multi_reduction <add>, %43, %cst_17 [1] : vector<8x8xf32> to vector<8xf32>
    %45 = vector.shape_cast %44 : vector<8xf32> to vector<8x1xf32>
    %46 = tpu.reciprocal %45 {approx = true} : vector<8x1xf32> -> vector<8x1xf32>
    %47 = vector.broadcast %46 : vector<8x1xf32> to vector<8x8xf32>
    %48 = arith.mulf %43, %47 : vector<8x8xf32>
    %49 = arith.truncf %48 : vector<8x8xf32> to vector<8x8xbf16>
    %cst_18 = arith.constant dense<0.000000e+00> : vector<8x8xf32>
    %50 = tpu.matmul %49, %37, %cst_18 {dimension_numbers = #tpu.dot_dimension_numbers<[1], [0], [0], [1], [0, 0, 1, 1], [], []>} : vector<8x8xbf16>, vector<8x8xbf16>, vector<8x8xf32> -> vector<8x8xf32>
    %c0_19 = arith.constant 0 : index
    %c0_20 = arith.constant 0 : index
    %51 = vector.load %arg9[%c0_19, %c0_20] : memref<8x32xf32, #tpu.memory_space<vmem>>, vector<8x8xf32>
    tpu.vector_store %arg9[%c0_19, %c0_20], %50 {strides = array<i32>} : memref<8x32xf32, #tpu.memory_space<vmem>>, vector<8x8xf32>,
    %52 = vector.extract_strided_slice %31 {offsets = [0, 8], sizes = [8, 8], strides = [1, 1]} : vector<8x96xf32> to vector<8x8xf32>
    %53 = arith.truncf %52 : vector<8x8xf32> to vector<8x8xbf16>
    %54 = vector.extract_strided_slice %31 {offsets = [0, 40], sizes = [8, 8], strides = [1, 1]} : vector<8x96xf32> to vector<8x8xf32>
    %55 = arith.truncf %54 : vector<8x8xf32> to vector<8x8xbf16>
    %56 = vector.extract_strided_slice %31 {offsets = [0, 72], sizes = [8, 8], strides = [1, 1]} : vector<8x96xf32> to vector<8x8xf32>
    %57 = arith.truncf %56 : vector<8x8xf32> to vector<8x8xbf16>
    %cst_21 = arith.constant dense<0.000000e+00> : vector<8x8xf32>
    %58 = tpu.matmul %53, %55, %cst_21 {dimension_numbers = #tpu.dot_dimension_numbers<[1], [1], [0], [0], [0, 0, 1, 0], [], []>} : vector<8x8xbf16>, vector<8x8xbf16>, vector<8x8xf32> -> vector<8x8xf32>
    %cst_22 = arith.constant dense<0xFF800000> : vector<8xf32>
    %59 = vector.multi_reduction <maximumf>, %58, %cst_22 [1] : vector<8x8xf32> to vector<8xf32>
    %60 = vector.shape_cast %59 : vector<8xf32> to vector<8x1xf32>
    %61 = vector.broadcast %60 : vector<8x1xf32> to vector<8x8xf32>
    %62 = arith.subf %58, %61 : vector<8x8xf32>
    %63 = math.exp %62 : vector<8x8xf32>
    %cst_23 = arith.constant dense<0.000000e+00> : vector<8xf32>
    %64 = vector.multi_reduction <add>, %63, %cst_23 [1] : vector<8x8xf32> to vector<8xf32>
    %65 = vector.shape_cast %64 : vector<8xf32> to vector<8x1xf32>
    %66 = tpu.reciprocal %65 {approx = true} : vector<8x1xf32> -> vector<8x1xf32>
    %67 = vector.broadcast %66 : vector<8x1xf32> to vector<8x8xf32>
    %68 = arith.mulf %63, %67 : vector<8x8xf32>
    %69 = arith.truncf %68 : vector<8x8xf32> to vector<8x8xbf16>
    %cst_24 = arith.constant dense<0.000000e+00> : vector<8x8xf32>
    %70 = tpu.matmul %69, %57, %cst_24 {dimension_numbers = #tpu.dot_dimension_numbers<[1], [0], [0], [1], [0, 0, 1, 1], [], []>} : vector<8x8xbf16>, vector<8x8xbf16>, vector<8x8xf32> -> vector<8x8xf32>
    %c0_25 = arith.constant 0 : index
    %c8 = arith.constant 8 : index
    %71 = vector.load %arg9[%c0_25, %c8] : memref<8x32xf32, #tpu.memory_space<vmem>>, vector<8x8xf32>
    tpu.vector_store %arg9[%c0_25, %c8], %70 {strides = array<i32>} : memref<8x32xf32, #tpu.memory_space<vmem>>, vector<8x8xf32>,
    %72 = vector.extract_strided_slice %31 {offsets = [0, 16], sizes = [8, 8], strides = [1, 1]} : vector<8x96xf32> to vector<8x8xf32>
    %73 = arith.truncf %72 : vector<8x8xf32> to vector<8x8xbf16>
    %74 = vector.extract_strided_slice %31 {offsets = [0, 48], sizes = [8, 8], strides = [1, 1]} : vector<8x96xf32> to vector<8x8xf32>
    %75 = arith.truncf %74 : vector<8x8xf32> to vector<8x8xbf16>
    %76 = vector.extract_strided_slice %31 {offsets = [0, 80], sizes = [8, 8], strides = [1, 1]} : vector<8x96xf32> to vector<8x8xf32>
    %77 = arith.truncf %76 : vector<8x8xf32> to vector<8x8xbf16>
    %cst_26 = arith.constant dense<0.000000e+00> : vector<8x8xf32>
    %78 = tpu.matmul %73, %75, %cst_26 {dimension_numbers = #tpu.dot_dimension_numbers<[1], [1], [0], [0], [0, 0, 1, 0], [], []>} : vector<8x8xbf16>, vector<8x8xbf16>, vector<8x8xf32> -> vector<8x8xf32>
    %cst_27 = arith.constant dense<0xFF800000> : vector<8xf32>
    %79 = vector.multi_reduction <maximumf>, %78, %cst_27 [1] : vector<8x8xf32> to vector<8xf32>
    %80 = vector.shape_cast %79 : vector<8xf32> to vector<8x1xf32>
    %81 = vector.broadcast %80 : vector<8x1xf32> to vector<8x8xf32>
    %82 = arith.subf %78, %81 : vector<8x8xf32>
    %83 = math.exp %82 : vector<8x8xf32>
    %cst_28 = arith.constant dense<0.000000e+00> : vector<8xf32>
    %84 = vector.multi_reduction <add>, %83, %cst_28 [1] : vector<8x8xf32> to vector<8xf32>
    %85 = vector.shape_cast %84 : vector<8xf32> to vector<8x1xf32>
    %86 = tpu.reciprocal %85 {approx = true} : vector<8x1xf32> -> vector<8x1xf32>
    %87 = vector.broadcast %86 : vector<8x1xf32> to vector<8x8xf32>
    %88 = arith.mulf %83, %87 : vector<8x8xf32>
    %89 = arith.truncf %88 : vector<8x8xf32> to vector<8x8xbf16>
    %cst_29 = arith.constant dense<0.000000e+00> : vector<8x8xf32>
    %90 = tpu.matmul %89, %77, %cst_29 {dimension_numbers = #tpu.dot_dimension_numbers<[1], [0], [0], [1], [0, 0, 1, 1], [], []>} : vector<8x8xbf16>, vector<8x8xbf16>, vector<8x8xf32> -> vector<8x8xf32>
    %c0_30 = arith.constant 0 : index
    %c16 = arith.constant 16 : index
    %91 = vector.load %arg9[%c0_30, %c16] : memref<8x32xf32, #tpu.memory_space<vmem>>, vector<8x8xf32>
    tpu.vector_store %arg9[%c0_30, %c16], %90 {strides = array<i32>} : memref<8x32xf32, #tpu.memory_space<vmem>>, vector<8x8xf32>,
    %92 = vector.extract_strided_slice %31 {offsets = [0, 24], sizes = [8, 8], strides = [1, 1]} : vector<8x96xf32> to vector<8x8xf32>
    %93 = arith.truncf %92 : vector<8x8xf32> to vector<8x8xbf16>
    %94 = vector.extract_strided_slice %31 {offsets = [0, 56], sizes = [8, 8], strides = [1, 1]} : vector<8x96xf32> to vector<8x8xf32>
    %95 = arith.truncf %94 : vector<8x8xf32> to vector<8x8xbf16>
    %96 = vector.extract_strided_slice %31 {offsets = [0, 88], sizes = [8, 8], strides = [1, 1]} : vector<8x96xf32> to vector<8x8xf32>
    %97 = arith.truncf %96 : vector<8x8xf32> to vector<8x8xbf16>
    %cst_31 = arith.constant dense<0.000000e+00> : vector<8x8xf32>
    %98 = tpu.matmul %93, %95, %cst_31 {dimension_numbers = #tpu.dot_dimension_numbers<[1], [1], [0], [0], [0, 0, 1, 0], [], []>} : vector<8x8xbf16>, vector<8x8xbf16>, vector<8x8xf32> -> vector<8x8xf32>
    %cst_32 = arith.constant dense<0xFF800000> : vector<8xf32>
    %99 = vector.multi_reduction <maximumf>, %98, %cst_32 [1] : vector<8x8xf32> to vector<8xf32>
    %100 = vector.shape_cast %99 : vector<8xf32> to vector<8x1xf32>
    %101 = vector.broadcast %100 : vector<8x1xf32> to vector<8x8xf32>
    %102 = arith.subf %98, %101 : vector<8x8xf32>
    %103 = math.exp %102 : vector<8x8xf32>
    %cst_33 = arith.constant dense<0.000000e+00> : vector<8xf32>
    %104 = vector.multi_reduction <add>, %103, %cst_33 [1] : vector<8x8xf32> to vector<8xf32>
    %105 = vector.shape_cast %104 : vector<8xf32> to vector<8x1xf32>
    %106 = tpu.reciprocal %105 {approx = true} : vector<8x1xf32> -> vector<8x1xf32>
    %107 = vector.broadcast %106 : vector<8x1xf32> to vector<8x8xf32>
    %108 = arith.mulf %103, %107 : vector<8x8xf32>
    %109 = arith.truncf %108 : vector<8x8xf32> to vector<8x8xbf16>
    %cst_34 = arith.constant dense<0.000000e+00> : vector<8x8xf32>
    %110 = tpu.matmul %109, %97, %cst_34 {dimension_numbers = #tpu.dot_dimension_numbers<[1], [0], [0], [1], [0, 0, 1, 1], [], []>} : vector<8x8xbf16>, vector<8x8xbf16>, vector<8x8xf32> -> vector<8x8xf32>
    %c0_35 = arith.constant 0 : index
    %c24 = arith.constant 24 : index
    %111 = vector.load %arg9[%c0_35, %c24] : memref<8x32xf32, #tpu.memory_space<vmem>>, vector<8x8xf32>
    tpu.vector_store %arg9[%c0_35, %c24], %110 {strides = array<i32>} : memref<8x32xf32, #tpu.memory_space<vmem>>, vector<8x8xf32>,
    %c0_36 = arith.constant 0 : index
    %c0_37 = arith.constant 0 : index
    %112 = vector.load %arg9[%c0_36, %c0_37] : memref<8x32xf32, #tpu.memory_space<vmem>>, vector<8x32xf32>
    %113 = arith.truncf %112 : vector<8x32xf32> to vector<8x32xbf16>
    %c0_38 = arith.constant 0 : index
    %c0_39 = arith.constant 0 : index
    %114 = vector.load %arg4[%c0_38, %c0_39] : memref<32x32xbf16, #tpu.memory_space<vmem>>, vector<32x32xbf16>
    %cst_40 = arith.constant dense<0.000000e+00> : vector<8x32xf32>
    %115 = tpu.matmul %113, %114, %cst_40 {dimension_numbers = #tpu.dot_dimension_numbers<[1], [0], [0], [1], [0, 0, 1, 1], [], []>} : vector<8x32xbf16>, vector<32x32xbf16>, vector<8x32xf32> -> vector<8x32xf32>
    %116 = arith.addf %1, %115 : vector<8x32xf32>
    %c0_41 = arith.constant 0 : index
    %c0_42 = arith.constant 0 : index
    %117 = vector.load %arg5[%c0_41, %c0_42] : memref<1x32xf32, #tpu.memory_space<vmem>>, vector<1x32xf32>
    %118 = vector.broadcast %117 : vector<1x32xf32> to vector<8x32xf32>
    %119 = arith.addf %116, %118 : vector<8x32xf32>
    %c0_43 = arith.constant 0 : index
    %c0_44 = arith.constant 0 : index
    %c0_45 = arith.constant 0 : index
    %120 = vector.load %arg8[%c0_43, %c0_44, %c0_45] : memref<1x8x32xf32, #tpu.memory_space<vmem>>, vector<1x8x32xf32>
    %121 = vector.shape_cast %120 : vector<1x8x32xf32> to vector<8x32xf32>
    %122 = vector.shape_cast %119 : vector<8x32xf32> to vector<1x8x32xf32>
    tpu.vector_store %arg8[%c0_43, %c0_44, %c0_45], %122 {strides = array<i32>} : memref<1x8x32xf32, #tpu.memory_space<vmem>>, vector<1x8x32xf32>,
    return
  }
  func.func @transform_0(%arg0: i32) -> (i32, i32, i32) {
    %c0_i32 = arith.constant 0 : i32
    %c0_i32_0 = arith.constant 0 : i32
    %c0_i32_1 = arith.constant 0 : i32
    return %arg0, %c0_i32, %c0_i32_0 : i32, i32, i32
  }
  func.func @transform_1(%arg0: i32) -> (i32, i32) {
    %c0_i32 = arith.constant 0 : i32
    %c0_i32_0 = arith.constant 0 : i32
    %c0_i32_1 = arith.constant 0 : i32
    return %c0_i32, %c0_i32_0 : i32, i32
  }
  func.func @transform_2(%arg0: i32) -> (i32, i32) {
    %c0_i32 = arith.constant 0 : i32
    %c0_i32_0 = arith.constant 0 : i32
    %c0_i32_1 = arith.constant 0 : i32
    return %c0_i32, %c0_i32_0 : i32, i32
  }
  func.func @transform_3(%arg0: i32) -> (i32, i32) {
    %c0_i32 = arith.constant 0 : i32
    %c0_i32_0 = arith.constant 0 : i32
    %c0_i32_1 = arith.constant 0 : i32
    return %c0_i32, %c0_i32_0 : i32, i32
  }
  func.func @transform_4(%arg0: i32) -> (i32, i32) {
    %c0_i32 = arith.constant 0 : i32
    %c0_i32_0 = arith.constant 0 : i32
    %c0_i32_1 = arith.constant 0 : i32
    return %c0_i32, %c0_i32_0 : i32, i32
  }
  func.func @transform_5(%arg0: i32) -> (i32, i32) {
    %c0_i32 = arith.constant 0 : i32
    %c0_i32_0 = arith.constant 0 : i32
    %c0_i32_1 = arith.constant 0 : i32
    return %c0_i32, %c0_i32_0 : i32, i32
  }
  func.func @transform_6(%arg0: i32) -> (i32, i32) {
    %c0_i32 = arith.constant 0 : i32
    %c0_i32_0 = arith.constant 0 : i32
    %c0_i32_1 = arith.constant 0 : i32
    return %c0_i32, %c0_i32_0 : i32, i32
  }
  func.func @transform_7(%arg0: i32) -> (i32, i32, i32) {
    %c0_i32 = arith.constant 0 : i32
    %c0_i32_0 = arith.constant 0 : i32
    %c0_i32_1 = arith.constant 0 : i32
    return %arg0, %c0_i32, %c0_i32_0 : i32, i32, i32
  }
}

</mosaic_0001>

<llo_original>
// kernel: tpu_custom_call.1
$region0: #{tpu_custom_call.1}
  #allocation0 [shape = 'u32[]', space=smem, size = 0x4, offset = 0x4, fixed_abs, tag = 'smem constant byte address 0x4 - core index']
  #allocation1 [shape = 'u32[72,128]{1,0:T(1,128)}', space=vmem, size = 0x9000, scoped, tag = 'internal scratch']
  #allocation2 [shape = 'f32[8,32]{1,0:T(8,128)}', space=vmem, size = 0x1000, scoped, tag = 'scratch operand']
  %s0 = inlined_call_operand.hbm [shape: f32[2,8,32], index: 0, kind: input, shape index: {}]
  %s1 = inlined_call_operand.hbm [shape: bf16[32,96], index: 1, kind: input, shape index: {}]
  %s2 = inlined_call_operand.vmem [shape: f32[1,96], index: 2, kind: input, shape index: {}]
  %s3 = inlined_call_operand.hbm [shape: bf16[32,32], index: 3, kind: input, shape index: {}]
  %s4 = inlined_call_operand.vmem [shape: f32[1,32], index: 4, kind: input, shape index: {}]
  %s5 = inlined_call_operand.vmem [shape: f32[1,32], index: 5, kind: input, shape index: {}]
  %s6 = inlined_call_operand.vmem [shape: f32[1,32], index: 6, kind: input, shape index: {}]
  %s7 = inlined_call_operand.hbm [shape: f32[2,8,32], index: 7, kind: output, shape index: {}]
  %s8 = sld [smem:[#allocation0]]
  $region73: #{tpu_custom_call.1} parent=0
    _
  %s10 = ssub.s32 1, %s8
  %s11 = scalar_select 0, %s10, %s8
  $region1: #{tpu_custom_call.1} parent=0
    #allocation3 [shape = 'u8[8192]{0}', space=vmem, size = 0x2000, scoped, tag = 'input window, operand 0']
    #allocation4 [shape = 's32[2]{0}', space=sflag, size = 0x8, scoped, tag = 'scoped memory for tpu_custom_call.1']
    #allocation5 [shape = 's32[2]{0}', space=sflag, size = 0x8, scoped, tag = 'scoped memory for tpu_custom_call.1']
    #allocation6 [shape = 'u8[8192]{0}', space=vmem, size = 0x2000, scoped, tag = 'input window, operand 1, single buffered']
    #allocation7 [shape = 's32[1]{0}', space=sflag, size = 0x4, scoped, tag = 'scoped memory for tpu_custom_call.1']
    #allocation8 [shape = 'u8[8192]{0}', space=vmem, size = 0x2000, scoped, tag = 'input window, operand 3, single buffered']
    #allocation9 [shape = 'u8[8192]{0}', space=vmem, size = 0x2000, scoped, tag = 'output window, operand 0']
    %12 = vsyncpa [#allocation4], 0
    %s13 = scalar_lea.sflag [#allocation4], 1
    %14 = vsyncpa %s13, 0
    %15 = vsyncpa [#allocation7], 0
    %16 = vsyncpa [#allocation5], 0
    %s17 = scalar_lea.sflag [#allocation5], 1
    %18 = vsyncpa %s17, 0
    loop: start=0, step=1, limit=4
    $region2: #{tpu_custom_call.1} parent=1 // loop_pre_header
      _
    $region3: #{tpu_custom_call.1} parent=1 // loop_header
      %s20 = sphi 0, %s24
      %p21 = scmp.ge.s32.totalorder %s20, 4
      %s30 = sphi 0, %s32
      %s33 = sphi 0, %s30
      %s34 = sphi 0, %s33
      %s50 = sphi 0, %s34
      %s54 = sphi 0, %s54
      %s56 = sphi 0, %s54
      %s57 = sphi 0, %s56
      %s71 = sphi 0, %s57
      %s75 = sphi 0, %s75
      %s77 = sphi 0, %s75
      %s78 = sphi 0, %s77
      %s92 = sphi 0, %s78
      %s96 = sphi 0, %s96
      %s98 = sphi 0, %s96
      %s99 = sphi 0, %s98
      %s113 = sphi 0, %s99
      %s117 = sphi 0, %s117
      %s119 = sphi 0, %s117
      %s120 = sphi 0, %s119
      %s134 = sphi 0, %s120
      %s138 = sphi 0, %s138
      %s140 = sphi 0, %s138
      %s141 = sphi 0, %s140
      %s155 = sphi 0, %s141
      %s159 = sphi 0, %s159
      %s161 = sphi 0, %s159
      %s162 = sphi 0, %s161
      %s176 = sphi 0, %s162
      %s182 = sphi 0, %s184
      %s185 = sphi 0, %s182
      %s186 = sphi 0, %s185
      %s202 = sphi 0, %s186
    $region4: #{tpu_custom_call.1} parent=1 // loop_header_branch
      %23 = sbr.rel (%p21) target = $region8
    $region5: #{tpu_custom_call.1} parent=1 // loop_body
      %s25 = ssub.s32 %s20, 1
      %s26 = ssub.s32 %s20, 2
      %s27 = sadd.s32 %s20, 1
      %s28 = ssub.s32 %s20, %s27
      %p29 = scmp.eq.s32.totalorder %s28, 0
      %s31 = sadd.s32 %s30, 1
      %s32 = scalar_select %p29, %s30, %s31
      %p35 = pneg %p29
      %p36 = scmp.eq.s32.totalorder %s20, 1
      %p37 = por %p35, %p36
      %p38 = scmp.ne.s32.totalorder %s30, %s33
      %p39 = scmp.eq.s32.totalorder %s20, 0
      %p40 = por %p38, %p39
      %p41 = scmp.ne.s32.totalorder %s30, %s33
      %p42 = scmp.eq.s32.totalorder %s25, 1
      %p43 = por %p41, %p42
      %p44 = scmp.ne.s32.totalorder %s33, %s34
      %p45 = scmp.eq.s32.totalorder %s25, 0
      %p46 = por %p44, %p45
      %p47 = scmp.ne.s32.totalorder %s33, %s34
      %p48 = scmp.eq.s32.totalorder %s26, 1
      %p49 = por %p47, %p48
      %p51 = scmp.ne.s32.totalorder %s34, %s50
      %p52 = scmp.eq.s32.totalorder %s26, 0
      %p53 = por %p51, %p52
      %s55 = sadd.s32 %s54, 1
      %p58 = scmp.eq.s32.totalorder %s20, 1
      %p59 = scmp.ne.s32.totalorder %s54, %s56
      %p60 = scmp.eq.s32.totalorder %s20, 0
      %p61 = por %p59, %p60
      %p62 = scmp.ne.s32.totalorder %s54, %s56
      %p63 = scmp.eq.s32.totalorder %s25, 1
      %p64 = por %p62, %p63
      %p65 = scmp.ne.s32.totalorder %s56, %s57
      %p66 = scmp.eq.s32.totalorder %s25, 0
      %p67 = por %p65, %p66
      %p68 = scmp.ne.s32.totalorder %s56, %s57
      %p69 = scmp.eq.s32.totalorder %s26, 1
      %p70 = por %p68, %p69
      %p72 = scmp.ne.s32.totalorder %s57, %s71
      %p73 = scmp.eq.s32.totalorder %s26, 0
      %p74 = por %p72, %p73
      %s76 = sadd.s32 %s75, 1
      %p79 = scmp.eq.s32.totalorder %s20, 1
      %p80 = scmp.ne.s32.totalorder %s75, %s77
      %p81 = scmp.eq.s32.totalorder %s20, 0
      %p82 = por %p80, %p81
      %p83 = scmp.ne.s32.totalorder %s75, %s77
      %p84 = scmp.eq.s32.totalorder %s25, 1
      %p85 = por %p83, %p84
      %p86 = scmp.ne.s32.totalorder %s77, %s78
      %p87 = scmp.eq.s32.totalorder %s25, 0
      %p88 = por %p86, %p87
      %p89 = scmp.ne.s32.totalorder %s77, %s78
      %p90 = scmp.eq.s32.totalorder %s26, 1
      %p91 = por %p89, %p90
      %p93 = scmp.ne.s32.totalorder %s78, %s92
      %p94 = scmp.eq.s32.totalorder %s26, 0
      %p95 = por %p93, %p94
      %s97 = sadd.s32 %s96, 1
      %p100 = scmp.eq.s32.totalorder %s20, 1
      %p101 = scmp.ne.s32.totalorder %s96, %s98
      %p102 = scmp.eq.s32.totalorder %s20, 0
      %p103 = por %p101, %p102
      %p104 = scmp.ne.s32.totalorder %s96, %s98
      %p105 = scmp.eq.s32.totalorder %s25, 1
      %p106 = por %p104, %p105
      %p107 = scmp.ne.s32.totalorder %s98, %s99
      %p108 = scmp.eq.s32.totalorder %s25, 0
      %p109 = por %p107, %p108
      %p110 = scmp.ne.s32.totalorder %s98, %s99
      %p111 = scmp.eq.s32.totalorder %s26, 1
      %p112 = por %p110, %p111
      %p114 = scmp.ne.s32.totalorder %s99, %s113
      %p115 = scmp.eq.s32.totalorder %s26, 0
      %p116 = por %p114, %p115
      %s118 = sadd.s32 %s117, 1
      %p121 = scmp.eq.s32.totalorder %s20, 1
      %p122 = scmp.ne.s32.totalorder %s117, %s119
      %p123 = scmp.eq.s32.totalorder %s20, 0
      %p124 = por %p122, %p123
      %p125 = scmp.ne.s32.totalorder %s117, %s119
      %p126 = scmp.eq.s32.totalorder %s25, 1
      %p127 = por %p125, %p126
      %p128 = scmp.ne.s32.totalorder %s119, %s120
      %p129 = scmp.eq.s32.totalorder %s25, 0
      %p130 = por %p128, %p129
      %p131 = scmp.ne.s32.totalorder %s119, %s120
      %p132 = scmp.eq.s32.totalorder %s26, 1
      %p133 = por %p131, %p132
      %p135 = scmp.ne.s32.totalorder %s120, %s134
      %p136 = scmp.eq.s32.totalorder %s26, 0
      %p137 = por %p135, %p136
      %s139 = sadd.s32 %s138, 1
      %p142 = scmp.eq.s32.totalorder %s20, 1
      %p143 = scmp.ne.s32.totalorder %s138, %s140
      %p144 = scmp.eq.s32.totalorder %s20, 0
      %p145 = por %p143, %p144
      %p146 = scmp.ne.s32.totalorder %s138, %s140
      %p147 = scmp.eq.s32.totalorder %s25, 1
      %p148 = por %p146, %p147
      %p149 = scmp.ne.s32.totalorder %s140, %s141
      %p150 = scmp.eq.s32.totalorder %s25, 0
      %p151 = por %p149, %p150
      %p152 = scmp.ne.s32.totalorder %s140, %s141
      %p153 = scmp.eq.s32.totalorder %s26, 1
      %p154 = por %p152, %p153
      %p156 = scmp.ne.s32.totalorder %s141, %s155
      %p157 = scmp.eq.s32.totalorder %s26, 0
      %p158 = por %p156, %p157
      %s160 = sadd.s32 %s159, 1
      %p163 = scmp.eq.s32.totalorder %s20, 1
      %p164 = scmp.ne.s32.totalorder %s159, %s161
      %p165 = scmp.eq.s32.totalorder %s20, 0
      %p166 = por %p164, %p165
      %p167 = scmp.ne.s32.totalorder %s159, %s161
      %p168 = scmp.eq.s32.totalorder %s25, 1
      %p169 = por %p167, %p168
      %p170 = scmp.ne.s32.totalorder %s161, %s162
      %p171 = scmp.eq.s32.totalorder %s25, 0
      %p172 = por %p170, %p171
      %p173 = scmp.ne.s32.totalorder %s161, %s162
      %p174 = scmp.eq.s32.totalorder %s26, 1
      %p175 = por %p173, %p174
      %p177 = scmp.ne.s32.totalorder %s162, %s176
      %p178 = scmp.eq.s32.totalorder %s26, 0
      %p179 = por %p177, %p178
      %s180 = ssub.s32 %s20, %s27
      %p181 = scmp.eq.s32.totalorder %s180, 0
      %s183 = sadd.s32 %s182, 1
      %s184 = scalar_select %p181, %s182, %s183
      %p187 = pneg %p181
      %p188 = scmp.eq.s32.totalorder %s20, 1
      %p189 = por %p187, %p188
      %p190 = scmp.ne.s32.totalorder %s182, %s185
      %p191 = scmp.eq.s32.totalorder %s20, 0
      %p192 = por %p190, %p191
      %p193 = scmp.ne.s32.totalorder %s182, %s185
      %p194 = scmp.eq.s32.totalorder %s25, 1
      %p195 = por %p193, %p194
      %p196 = scmp.ne.s32.totalorder %s185, %s186
      %p197 = scmp.eq.s32.totalorder %s25, 0
      %p198 = por %p196, %p197
      %p199 = scmp.ne.s32.totalorder %s185, %s186
      %p200 = scmp.eq.s32.totalorder %s26, 1
      %p201 = por %p199, %p200
      %p203 = scmp.ne.s32.totalorder %s186, %s202
      %p204 = scmp.eq.s32.totalorder %s26, 0
      %p205 = por %p203, %p204
      %p206 = scmp.le.s32.totalorder 1, %s20
      %p207 = scmp.lt.s32.totalorder %s20, 3
      %p208 = pnand %p206, %p207
      %p209 = pneg %p208
      // Predicated region
      $region9: #{tpu_custom_call.1} parent=5 // pred_check
        _
      $region10: #{tpu_custom_call.1} parent=5 // pred_check_branch
        %211 = sbr.rel (%p208) target = $region12
      $region11: #{tpu_custom_call.1} parent=5 // pred_region
        %s212 = ssub.s32 %s20, 1
        // Predicated region
        $region13: #{tpu_custom_call.1} parent=11 // pred_check
          %p213 = pneg %p67
        $region14: #{tpu_custom_call.1} parent=11 // pred_check_branch
          %215 = sbr.rel (%p213) target = $region16
        $region15: #{tpu_custom_call.1} parent=11 // pred_region
          %217 = vsyncadd [#allocation7], 0
          %s218 = sshll.u32 %s1, 4
          %s219 = int_to_ptr.hbm [resolvable:$true] %s218
          %s220 = sshll.u32 [#allocation6], 4
          %s221 = int_to_ptr.vmem [resolvable:$true] %s220
          %226 = dma.hbm_to_vmem [thread:$0]  %s219, 256, %s221, [#allocation7], 64, 64, 4
        $region16: #{tpu_custom_call.1} parent=11 // pred_fallthru
          _
        // Predicated region
        $region17: #{tpu_custom_call.1} parent=11 // pred_check
          %p227 = pneg %p88
        $region18: #{tpu_custom_call.1} parent=11 // pred_check_branch
          %229 = sbr.rel (%p227) target = $region20
        $region19: #{tpu_custom_call.1} parent=11 // pred_region
          _
        $region20: #{tpu_custom_call.1} parent=11 // pred_fallthru
          _
        // Predicated region
        $region21: #{tpu_custom_call.1} parent=11 // pred_check
          %p230 = pneg %p109
        $region22: #{tpu_custom_call.1} parent=11 // pred_check_branch
          %232 = sbr.rel (%p230) target = $region24
        $region23: #{tpu_custom_call.1} parent=11 // pred_region
          %234 = vsyncadd [#allocation7], 0
          %s235 = sshll.u32 %s3, 4
          %s236 = int_to_ptr.hbm [resolvable:$true] %s235
          %s237 = sshll.u32 [#allocation8], 4
          %s238 = int_to_ptr.vmem [resolvable:$true] %s237
          %243 = dma.hbm_to_vmem [thread:$0]  %s236, 256, %s238, [#allocation7], 64, 64, 4
        $region24: #{tpu_custom_call.1} parent=11 // pred_fallthru
          _
        // Predicated region
        $region25: #{tpu_custom_call.1} parent=11 // pred_check
          %p244 = pneg %p130
        $region26: #{tpu_custom_call.1} parent=11 // pred_check_branch
          %246 = sbr.rel (%p244) target = $region28
        $region27: #{tpu_custom_call.1} parent=11 // pred_region
          _
        $region28: #{tpu_custom_call.1} parent=11 // pred_fallthru
          _
        // Predicated region
        $region29: #{tpu_custom_call.1} parent=11 // pred_check
          %p247 = pneg %p151
        $region30: #{tpu_custom_call.1} parent=11 // pred_check_branch
          %249 = sbr.rel (%p247) target = $region32
        $region31: #{tpu_custom_call.1} parent=11 // pred_region
          _
        $region32: #{tpu_custom_call.1} parent=11 // pred_fallthru
          _
        // Predicated region
        $region33: #{tpu_custom_call.1} parent=11 // pred_check
          %p250 = pneg %p172
        $region34: #{tpu_custom_call.1} parent=11 // pred_check_branch
          %252 = sbr.rel (%p250) target = $region36
        $region35: #{tpu_custom_call.1} parent=11 // pred_region
          _
        $region36: #{tpu_custom_call.1} parent=11 // pred_fallthru
          _
      $region12: #{tpu_custom_call.1} parent=5 // pred_fallthru
        _
      %p253 = scmp.lt.s32.totalorder %s20, 2
      // Predicated region
      $region37: #{tpu_custom_call.1} parent=5 // pred_check
        %p254 = pneg %p253
      $region38: #{tpu_custom_call.1} parent=5 // pred_check_branch
        %256 = sbr.rel (%p254) target = $region40
      $region39: #{tpu_custom_call.1} parent=5 // pred_region
        // Predicated region
        $region41: #{tpu_custom_call.1} parent=39 // pred_check
          %p257 = pneg %p40
        $region42: #{tpu_custom_call.1} parent=39 // pred_check_branch
          %259 = sbr.rel (%p257) target = $region44
        $region43: #{tpu_custom_call.1} parent=39 // pred_region
          %s260 = sand.u32 %s30, 1
          %s261 = scalar_lea.sflag [#allocation4], %s260
          %s262 = sand.u32 %s30, 1
          %s263 = smul.addr %s262, 8
          %s264 = scalar_lea.vmem [#allocation3], %s263
          %266 = vsyncadd %s261, 0
          %s267 = smul.addr %s20, 8
          %s268 = scalar_lea.hbm %s0, %s267
          %s270 = sshll.u32 %s268, 4
          %s271 = int_to_ptr.hbm [resolvable:$true] %s270
          %s272 = sshll.u32 %s264, 4
          %s273 = int_to_ptr.vmem [resolvable:$true] %s272
          %275 = dma.hbm_to_vmem [thread:$0]  %s271, 128, %s273, %s261
        $region44: #{tpu_custom_call.1} parent=39 // pred_fallthru
          _
      $region40: #{tpu_custom_call.1} parent=5 // pred_fallthru
        _
      %p276 = scmp.le.s32.totalorder 1, %s20
      %p277 = scmp.lt.s32.totalorder %s20, 3
      %p278 = pnand %p276, %p277
      %p279 = pneg %p278
      // Predicated region
      $region45: #{tpu_custom_call.1} parent=5 // pred_check
        _
      $region46: #{tpu_custom_call.1} parent=5 // pred_check_branch
        %281 = sbr.rel (%p278) target = $region48
      $region47: #{tpu_custom_call.1} parent=5 // pred_region
        %s282 = ssub.s32 %s20, 1
        %s283 = sand.u32 %s33, 1
        %s284 = scalar_lea.sflag [#allocation4], %s283
        %s285 = sand.u32 %s33, 1
        %s286 = smul.addr %s285, 8
        %s287 = scalar_lea.vmem [#allocation3], %s286
        // Predicated region
        $region49: #{tpu_custom_call.1} parent=47 // pred_check
          %p288 = pneg %p46
        $region50: #{tpu_custom_call.1} parent=47 // pred_check_branch
          %290 = sbr.rel (%p288) target = $region52
        $region51: #{tpu_custom_call.1} parent=47 // pred_region
          %292 = dma.done %s284, 128
        $region52: #{tpu_custom_call.1} parent=47 // pred_fallthru
          _
        // Predicated region
        $region53: #{tpu_custom_call.1} parent=47 // pred_check
          %p293 = pneg %p67
        $region54: #{tpu_custom_call.1} parent=47 // pred_check_branch
          %295 = sbr.rel (%p293) target = $region56
        $region55: #{tpu_custom_call.1} parent=47 // pred_region
          %297 = dma.done [#allocation7], 256
        $region56: #{tpu_custom_call.1} parent=47 // pred_fallthru
          _
        // Predicated region
        $region57: #{tpu_custom_call.1} parent=47 // pred_check
          %p298 = pneg %p109
        $region58: #{tpu_custom_call.1} parent=47 // pred_check_branch
          %300 = sbr.rel (%p298) target = $region60
        $region59: #{tpu_custom_call.1} parent=47 // pred_region
          %302 = dma.done [#allocation7], 256
        $region60: #{tpu_custom_call.1} parent=47 // pred_fallthru
          _
        %s303 = sand.u32 %s33, 1
        %s304 = scalar_lea.sflag [#allocation4], %s303
        %s305 = sand.u32 %s33, 1
        %s306 = smul.addr %s305, 8
        %s307 = scalar_lea.vmem [#allocation3], %s306
        %p308 = pneg %p46
        %p309 = pneg %p43
        %p310 = pneg %p67
        %p311 = pneg %p64
        %p312 = pneg %p88
        %p313 = pneg %p85
        %p314 = pneg %p109
        %p315 = pneg %p106
        %p316 = pneg %p130
        %p317 = pneg %p127
        %p318 = pneg %p151
        %p319 = pneg %p148
        %p320 = pneg %p172
        %p321 = pneg %p169
        %p322 = pneg %p198
        %p323 = pneg %p195
        %s324 = sand.u32 %s185, 1
        %s325 = scalar_lea.sflag [#allocation5], %s324
        %s326 = sand.u32 %s185, 1
        %s327 = smul.addr %s326, 8
        %s328 = scalar_lea.vmem [#allocation9], %s327
        %v330 = vld [vmem:[%s287] sm:$0xff]
        %v331 = vld [vmem:[%s5] sm:$0x1]
        %v332 = vld [vmem:[%s6] sm:$0x1]
        %vm333 = vcmask 261120
        %v334 = vsel %vm333, %v330, 0.0
        %335 = vadd.xlane.f32.xlu0 %v334
        %v336 = vpop.xlane.xlu0 %335
        %v337 = vrcp.pop 32.0
        %v338 = vmul.f32 32.0, %v337
        %v339 = vsub.f32 1.0, %v338
        %v340 = vmul.f32 %v337, %v339
        %v341 = vadd.f32 %v337, %v340
        %vm342 = vweird.f32 %v337
        %v343 = vsel %vm342, %v337, %v341
        %v344 = vmul.f32 %v336, %v343
        %v345 = vsub.f32 %v330, %v344
        %v346 = vmul.f32 %v345, %v345
        %v347 = vsel %vm333, %v346, 0.0
        %348 = vadd.xlane.f32.xlu0 %v347
        %v349 = vpop.xlane.xlu0 %348
        %v350 = vmul.f32 %v349, %v343
        %v351 = vadd.f32 %v350, 1e-05
        %v352 = vrsqrt.pop %v351
        %v353 = vmul.f32 %v352, %v351
        %v354 = vmul.f32 %v353, %v352
        %v355 = vmul.f32 0.5, %v354
        %v356 = vsub.f32 1.5, %v355
        %v357 = vmul.f32 %v352, %v356
        %vm358 = vweird.f32 %v351
        %vm359 = vweird.f32 %v352
        %vm360 = vmor %vm358, %vm359
        %v361 = vsel %vm360, %v352, %v357
        %v362 = vmul.f32 %v345, %v361
        %v364 = vperm.slane %v331, 0
        %v366 = vmul.f32 %v362, %v364
        %v368 = vperm.slane %v332, 0
        %v370 = vadd.f32 %v366, %v368
        %v371 = vpack.c.bf16 %v370, %v370
        %v372 = vld [vmem:[#allocation6] sm:$0xf]
        %v373 = vld [vmem:[#allocation6 + $0x4] sm:$0xf]
        %v374 = vld [vmem:[#allocation6 + $0x8] sm:$0xf]
        %v375 = vld [vmem:[#allocation6 + $0xc] sm:$0xf]
        %v376 = vld [vmem:[%s2] sm:$0x1]
        %v378 = vperm.slane %v376, 0
        %v384 = vunpack.c.l.b16 %v372
        %v385 = vunpack.c.l.b16 %v373
        %v386 = vunpack.c.l.b16 %v374
        %v387 = vunpack.c.l.b16 %v375
        %v388 = vpack.c.b16 %v385, %v384
        %v389 = vpack.c.b16 %v387, %v386
        %v393 = vsel %vm333, %v371, 0
        %395 = vmatpush.bf16.msra.mxu0 0
        %396 = vmatpush.bf16.msra.mxu0 0
        %397 = vmatpush.bf16.msra.mxu0 0
        %398 = vmatpush.bf16.msra.mxu0 0
        %399 = vmatpush.bf16.msra.mxu0 0
        %400 = vmatpush.bf16.msra.mxu0 0
        %401 = vmatpush.bf16.msra.mxu0 %v389
        %402 = vmatpush.bf16.msra.mxu0 %v388
        %403 = vmatmul.bf16.gmra.mxu0 %v393
        %v404 = vpop.f32.mrf.mxu0
        %v405 = vadd.f32 %v378, %v404
        %v406 = vpop.f32.mrf.mxu0
        %407 = vdwg.mxu0
        %v408 = vpack.c.bf16 %v405, %v405
        %410 = vrot.lane.b32.xlu0 %v408, 96
        %v411 = vpop.permute.xlu0 %410
        %vm412 = vcmask 64512
        %v414 = vsel %vm412, %v408, 0
        %v417 = vsel %vm412, %v411, 0
        %419 = vmatpush.bf16.xpose.msra.mxu0 0
        %420 = vmatpush.bf16.xpose.msra.mxu0 0
        %421 = vmatpush.bf16.xpose.msra.mxu0 0
        %422 = vmatpush.bf16.xpose.msra.mxu0 0
        %423 = vmatpush.bf16.xpose.msra.mxu0 0
        %424 = vmatpush.bf16.xpose.msra.mxu0 0
        %425 = vmatpush.bf16.xpose.msra.mxu0 0
        %426 = vmatpush.bf16.xpose.msra.mxu0 %v417
        %427 = vmatmul.bf16.gmra.mxu0 %v414
        %v428 = vpop.f32.mrf.mxu0
        %v429 = vadd.f32 0.0, %v428
        %v430 = vpop.f32.mrf.mxu0
        %431 = vdwg.mxu0
        %v432 = vsel %vm412, %v429, -inf
        %433 = vmax.xlane.f32.xlu0 %v432
        %v434 = vpop.xlane.xlu0 %433
        %v435 = vsub.f32 %v429, %v434
        %v436 = vmul.f32 %v435, 1.442695
        %v437 = vpow.pop %v436
        %v438 = vsel %vm412, %v437, 0.0
        %439 = vadd.xlane.f32.xlu0 %v438
        %v440 = vpop.xlane.xlu0 %439
        %v441 = vrcp.pop %v440
        %v442 = vmul.f32 %v437, %v441
        %v443 = vpack.c.bf16 %v442, %v442
        %444 = vrot.lane.b32.xlu0 %v408, 64
        %v445 = vpop.permute.xlu0 %444
        %v447 = vsel %vm412, %v443, 0
        %vm449 = vcmask 1043456
        %v451 = vsel %vm449, %v445, 0
        %453 = vmatpush.bf16.msra.mxu0 0
        %454 = vmatpush.bf16.msra.mxu0 0
        %455 = vmatpush.bf16.msra.mxu0 0
        %456 = vmatpush.bf16.msra.mxu0 0
        %457 = vmatpush.bf16.msra.mxu0 0
        %458 = vmatpush.bf16.msra.mxu0 0
        %459 = vmatpush.bf16.msra.mxu0 0
        %460 = vmatpush.bf16.msra.mxu0 %v451
        %461 = vmatmul.bf16.gmra.mxu0 %v447
        %v462 = vpop.f32.mrf.mxu0
        %v463 = vadd.f32 0.0, %v462
        %v464 = vpop.f32.mrf.mxu0
        %465 = vdwg.mxu0
        %466 = vst.msk [vmem:[#allocation2] sm:$0xff] %vm412, %v463
        %467 = vrot.lane.b32.xlu0 %v408, 120
        %v468 = vpop.permute.xlu0 %467
        %469 = vrot.lane.b32.xlu0 %v408, 88
        %v470 = vpop.permute.xlu0 %469
        %v472 = vsel %vm412, %v468, 0
        %v475 = vsel %vm412, %v470, 0
        %477 = vmatpush.bf16.xpose.msra.mxu0 0
        %478 = vmatpush.bf16.xpose.msra.mxu0 0
        %479 = vmatpush.bf16.xpose.msra.mxu0 0
        %480 = vmatpush.bf16.xpose.msra.mxu0 0
        %481 = vmatpush.bf16.xpose.msra.mxu0 0
        %482 = vmatpush.bf16.xpose.msra.mxu0 0
        %483 = vmatpush.bf16.xpose.msra.mxu0 0
        %484 = vmatpush.bf16.xpose.msra.mxu0 %v475
        %485 = vmatmul.bf16.gmra.mxu0 %v472
        %v486 = vpop.f32.mrf.mxu0
        %v487 = vadd.f32 0.0, %v486
        %v488 = vpop.f32.mrf.mxu0
        %489 = vdwg.mxu0
        %v490 = vsel %vm412, %v487, -inf
        %491 = vmax.xlane.f32.xlu0 %v490
        %v492 = vpop.xlane.xlu0 %491
        %v493 = vsub.f32 %v487, %v492
        %v494 = vmul.f32 %v493, 1.442695
        %v495 = vpow.pop %v494
        %v496 = vsel %vm412, %v495, 0.0
        %497 = vadd.xlane.f32.xlu0 %v496
        %v498 = vpop.xlane.xlu0 %497
        %v499 = vrcp.pop %v498
        %v500 = vmul.f32 %v495, %v499
        %v501 = vpack.c.bf16 %v500, %v500
        %502 = vrot.lane.b32.xlu0 %v408, 56
        %v503 = vpop.permute.xlu0 %502
        %v505 = vsel %vm412, %v501, 0
        %v508 = vsel %vm449, %v503, 0
        %510 = vmatpush.bf16.msra.mxu0 0
        %511 = vmatpush.bf16.msra.mxu0 0
        %512 = vmatpush.bf16.msra.mxu0 0
        %513 = vmatpush.bf16.msra.mxu0 0
        %514 = vmatpush.bf16.msra.mxu0 0
        %515 = vmatpush.bf16.msra.mxu0 0
        %516 = vmatpush.bf16.msra.mxu0 0
        %517 = vmatpush.bf16.msra.mxu0 %v508
        %518 = vmatmul.bf16.gmra.mxu0 %v505
        %v519 = vpop.f32.mrf.mxu0
        %v520 = vadd.f32 0.0, %v519
        %v521 = vpop.f32.mrf.mxu0
        %522 = vdwg.mxu0
        %524 = vrot.lane.b32.xlu0 %v520, 8
        %v525 = vpop.permute.xlu0 %524
        %vm527 = vcmask 130112
        %528 = vst.msk [vmem:[#allocation2] sm:$0xff] %vm527, %v525
        %529 = vrot.lane.b32.xlu0 %v408, 112
        %v530 = vpop.permute.xlu0 %529
        %531 = vrot.lane.b32.xlu0 %v408, 80
        %v532 = vpop.permute.xlu0 %531
        %v534 = vsel %vm412, %v530, 0
        %v537 = vsel %vm412, %v532, 0
        %539 = vmatpush.bf16.xpose.msra.mxu0 0
        %540 = vmatpush.bf16.xpose.msra.mxu0 0
        %541 = vmatpush.bf16.xpose.msra.mxu0 0
        %542 = vmatpush.bf16.xpose.msra.mxu0 0
        %543 = vmatpush.bf16.xpose.msra.mxu0 0
        %544 = vmatpush.bf16.xpose.msra.mxu0 0
        %545 = vmatpush.bf16.xpose.msra.mxu0 0
        %546 = vmatpush.bf16.xpose.msra.mxu0 %v537
        %547 = vmatmul.bf16.gmra.mxu0 %v534
        %v548 = vpop.f32.mrf.mxu0
        %v549 = vadd.f32 0.0, %v548
        %v550 = vpop.f32.mrf.mxu0
        %551 = vdwg.mxu0
        %v552 = vsel %vm412, %v549, -inf
        %553 = vmax.xlane.f32.xlu0 %v552
        %v554 = vpop.xlane.xlu0 %553
        %v555 = vsub.f32 %v549, %v554
        %v556 = vmul.f32 %v555, 1.442695
        %v557 = vpow.pop %v556
        %v558 = vsel %vm412, %v557, 0.0
        %559 = vadd.xlane.f32.xlu0 %v558
        %v560 = vpop.xlane.xlu0 %559
        %v561 = vrcp.pop %v560
        %v562 = vmul.f32 %v557, %v561
        %v563 = vpack.c.bf16 %v562, %v562
        %564 = vrot.lane.b32.xlu0 %v408, 48
        %v565 = vpop.permute.xlu0 %564
        %v567 = vsel %vm412, %v563, 0
        %v570 = vsel %vm449, %v565, 0
        %572 = vmatpush.bf16.msra.mxu0 0
        %573 = vmatpush.bf16.msra.mxu0 0
        %574 = vmatpush.bf16.msra.mxu0 0
        %575 = vmatpush.bf16.msra.mxu0 0
        %576 = vmatpush.bf16.msra.mxu0 0
        %577 = vmatpush.bf16.msra.mxu0 0
        %578 = vmatpush.bf16.msra.mxu0 0
        %579 = vmatpush.bf16.msra.mxu0 %v570
        %580 = vmatmul.bf16.gmra.mxu0 %v567
        %v581 = vpop.f32.mrf.mxu0
        %v582 = vadd.f32 0.0, %v581
        %v583 = vpop.f32.mrf.mxu0
        %584 = vdwg.mxu0
        %586 = vrot.lane.b32.xlu0 %v582, 16
        %v587 = vpop.permute.xlu0 %586
        %vm589 = vcmask 195712
        %590 = vst.msk [vmem:[#allocation2] sm:$0xff] %vm589, %v587
        %591 = vrot.lane.b32.xlu0 %v408, 104
        %v592 = vpop.permute.xlu0 %591
        %593 = vrot.lane.b32.xlu0 %v408, 72
        %v594 = vpop.permute.xlu0 %593
        %v596 = vsel %vm412, %v592, 0
        %v599 = vsel %vm412, %v594, 0
        %601 = vmatpush.bf16.xpose.msra.mxu0 0
        %602 = vmatpush.bf16.xpose.msra.mxu0 0
        %603 = vmatpush.bf16.xpose.msra.mxu0 0
        %604 = vmatpush.bf16.xpose.msra.mxu0 0
        %605 = vmatpush.bf16.xpose.msra.mxu0 0
        %606 = vmatpush.bf16.xpose.msra.mxu0 0
        %607 = vmatpush.bf16.xpose.msra.mxu0 0
        %608 = vmatpush.bf16.xpose.msra.mxu0 %v599
        %609 = vmatmul.bf16.gmra.mxu0 %v596
        %v610 = vpop.f32.mrf.mxu0
        %v611 = vadd.f32 0.0, %v610
        %v612 = vpop.f32.mrf.mxu0
        %613 = vdwg.mxu0
        %v614 = vsel %vm412, %v611, -inf
        %615 = vmax.xlane.f32.xlu0 %v614
        %v616 = vpop.xlane.xlu0 %615
        %v617 = vsub.f32 %v611, %v616
        %v618 = vmul.f32 %v617, 1.442695
        %v619 = vpow.pop %v618
        %v620 = vsel %vm412, %v619, 0.0
        %621 = vadd.xlane.f32.xlu0 %v620
        %v622 = vpop.xlane.xlu0 %621
        %v623 = vrcp.pop %v622
        %v624 = vmul.f32 %v619, %v623
        %v625 = vpack.c.bf16 %v624, %v624
        %626 = vrot.lane.b32.xlu0 %v408, 40
        %v627 = vpop.permute.xlu0 %626
        %v629 = vsel %vm412, %v625, 0
        %v632 = vsel %vm449, %v627, 0
        %634 = vmatpush.bf16.msra.mxu0 0
        %635 = vmatpush.bf16.msra.mxu0 0
        %636 = vmatpush.bf16.msra.mxu0 0
        %637 = vmatpush.bf16.msra.mxu0 0
        %638 = vmatpush.bf16.msra.mxu0 0
        %639 = vmatpush.bf16.msra.mxu0 0
        %640 = vmatpush.bf16.msra.mxu0 0
        %641 = vmatpush.bf16.msra.mxu0 %v632
        %642 = vmatmul.bf16.gmra.mxu0 %v629
        %v643 = vpop.f32.mrf.mxu0
        %v644 = vadd.f32 0.0, %v643
        %v645 = vpop.f32.mrf.mxu0
        %646 = vdwg.mxu0
        %648 = vrot.lane.b32.xlu0 %v644, 24
        %v649 = vpop.permute.xlu0 %648
        %vm651 = vcmask 261312
        %652 = vst.msk [vmem:[#allocation2] sm:$0xff] %vm651, %v649
        %v653 = vld [vmem:[#allocation2] sm:$0xff]
        %v654 = vpack.c.bf16 %v653, %v653
        %v655 = vld [vmem:[#allocation8] sm:$0xf]
        %v656 = vld [vmem:[#allocation8 + $0x4] sm:$0xf]
        %v657 = vld [vmem:[#allocation8 + $0x8] sm:$0xf]
        %v658 = vld [vmem:[#allocation8 + $0xc] sm:$0xf]
        %v663 = vunpack.c.l.b16 %v655
        %v664 = vunpack.c.l.b16 %v656
        %v665 = vunpack.c.l.b16 %v657
        %v666 = vunpack.c.l.b16 %v658
        %v667 = vpack.c.b16 %v664, %v663
        %v668 = vpack.c.b16 %v666, %v665
        %v672 = vsel %vm333, %v654, 0
        %674 = vmatpush.bf16.msra.mxu0 0
        %675 = vmatpush.bf16.msra.mxu0 0
        %676 = vmatpush.bf16.msra.mxu0 0
        %677 = vmatpush.bf16.msra.mxu0 0
        %678 = vmatpush.bf16.msra.mxu0 0
        %679 = vmatpush.bf16.msra.mxu0 0
        %680 = vmatpush.bf16.msra.mxu0 %v668
        %681 = vmatpush.bf16.msra.mxu0 %v667
        %682 = vmatmul.bf16.gmra.mxu0 %v672
        %v683 = vpop.f32.mrf.mxu0
        %v684 = vadd.f32 0.0, %v683
        %v685 = vpop.f32.mrf.mxu0
        %686 = vdwg.mxu0
        %v687 = vadd.f32 %v330, %v684
        %v688 = vld [vmem:[%s4] sm:$0x1]
        %v690 = vperm.slane %v688, 0
        %v692 = vadd.f32 %v687, %v690
        %693 = vst.msk [vmem:[%s328] sm:$0xff] %vm333, %v692
        %s694 = sand.u32 %s185, 1
        %s695 = scalar_lea.sflag [#allocation5], %s694
        %s696 = sand.u32 %s185, 1
        %s697 = smul.addr %s696, 8
        %s698 = scalar_lea.vmem [#allocation9], %s697
        // Predicated region
        $region61: #{tpu_custom_call.1} parent=47 // pred_check
          %p699 = pneg %p195
        $region62: #{tpu_custom_call.1} parent=47 // pred_check_branch
          %701 = sbr.rel (%p699) target = $region64
        $region63: #{tpu_custom_call.1} parent=47 // pred_region
          %703 = vsyncadd %s695, 0
          %s704 = smul.addr %s25, 8
          %s705 = scalar_lea.hbm %s7, %s704
          %s707 = sshll.u32 %s698, 4
          %s708 = int_to_ptr.vmem [resolvable:$true] %s707
          %s709 = sshll.u32 %s705, 4
          %s710 = int_to_ptr.hbm [resolvable:$true] %s709
          %712 = dma.vmem_to_hbm [thread:$0]  %s708, 128, %s710, %s695
        $region64: #{tpu_custom_call.1} parent=47 // pred_fallthru
          _
      $region48: #{tpu_custom_call.1} parent=5 // pred_fallthru
        _
      %p713 = scmp.le.s32.totalorder 2, %s20
      // Predicated region
      $region65: #{tpu_custom_call.1} parent=5 // pred_check
        %p714 = pneg %p713
      $region66: #{tpu_custom_call.1} parent=5 // pred_check_branch
        %716 = sbr.rel (%p714) target = $region68
      $region67: #{tpu_custom_call.1} parent=5 // pred_region
        %s717 = ssub.s32 %s20, 2
        // Predicated region
        $region69: #{tpu_custom_call.1} parent=67 // pred_check
          %p718 = pneg %p201
        $region70: #{tpu_custom_call.1} parent=67 // pred_check_branch
          %720 = sbr.rel (%p718) target = $region72
        $region71: #{tpu_custom_call.1} parent=67 // pred_region
          %s721 = sand.u32 %s186, 1
          %s722 = scalar_lea.sflag [#allocation5], %s721
          %s723 = sand.u32 %s186, 1
          %s724 = smul.addr %s723, 8
          %s725 = scalar_lea.vmem [#allocation9], %s724
          %727 = dma.done %s722, 128
        $region72: #{tpu_custom_call.1} parent=67 // pred_fallthru
          _
      $region68: #{tpu_custom_call.1} parent=5 // pred_fallthru
        _
    $region6: #{tpu_custom_call.1} parent=1 // loop_footer
      %s24 = sadd.s32 1, %s20
    $region7: #{tpu_custom_call.1} parent=1 // loop_footer_branch
      %19 = sbr.rel target = $region3
    $region8: #{tpu_custom_call.1} parent=1 // loop_exit
      _
    %728 = vsyncpa [#allocation4], 1
    %s729 = scalar_lea.sflag [#allocation4], 1
    %730 = vsyncpa %s729, 1
    %731 = vsyncpa [#allocation7], 1
    %732 = vsyncpa [#allocation5], 1
    %s733 = scalar_lea.sflag [#allocation5], 1
    %734 = vsyncpa %s733, 1

</llo_original>
